<compile_context>
chip_gen: v7x
topology: tpu7x:2x2x1
jax: 0.10.0
libtpu: 0.0.40
codegen_flags: <defaults>
</compile_context>

<pallas_src>
import functools

import jax
import jax.numpy as jnp
from jax.experimental import pallas as pl
from jax.experimental.pallas import tpu as pltpu


def _round_up(x, m):
    return (x + m - 1) // m * m


def _btconv_kernel(x_ref, w_ref, b_ref, o_ref):
    # x_ref: (tile_m, 3*C_in) bf16   -- gathered (self,left,right) rows
    # w_ref: (3*C_in, C_out)  bf16   -- resident across the whole grid
    # b_ref: (1, C_out)       f32    -- resident
    # o_ref: (tile_m, C_out)  f32
    y = jnp.dot(x_ref[...], w_ref[...], preferred_element_type=jnp.float32)
    o_ref[...] = (y + b_ref[...]).astype(o_ref.dtype)


@functools.partial(jax.jit, static_argnames=("tile_m",))
def binary_tree_conv(trees, idxes, weight, bias, *, tile_m=256):
    """
    trees:  (B, C_in, N)     float  -- PyTorch NCW layout
    idxes:  (B, 3*L, 1)      int32  -- gather indices along the node axis
    weight: (C_out, C_in, 3) float  -- nn.Conv1d(C_in, C_out, k=3, stride=3) weight
    bias:   (C_out,)         float
    returns (results (B, C_out, L+1), idxes)   -- same as the PyTorch module

    tile_m: M-tile of the flattened B*L GEMM. 256 suits v6e/v7x; use 128 on v5e.
    """
    B, C_in, N = trees.shape
    L = idxes.shape[1] // 3
    C_out = weight.shape[0]
    K = 3 * C_in
    out_dtype = trees.dtype

    # --- glue: gather the (self, left, right) triples into GEMM-lhs rows.
    # XLA fuses transpose + gather + bf16 cast into a single pass that directly
    # produces the (B*L, 3*C_in) bf16 operand consumed by the kernel.
    # TODO(synk): fuse this gather into the kernel (scalar-prefetched idxes +
    # in-kernel row gather / manual DMA) to drop the intermediate HBM array.
    idx = idxes[..., 0]                                              # (B, 3L)
    trees_t = jnp.transpose(trees, (0, 2, 1))                        # (B, N, C_in)
    gathered = jnp.take_along_axis(trees_t, idx[..., None], axis=1)  # (B, 3L, C_in)
    x = gathered.reshape(B * L, K).astype(jnp.bfloat16)

    # --- glue: Conv1d(k=3, stride=3) weight as a matmul operand.
    # Wmat[slot*C_in + c, o] = weight[o, c, slot]
    w_mat = jnp.transpose(weight, (2, 1, 0)).reshape(K, C_out).astype(jnp.bfloat16)
    b_mat = bias.reshape(1, C_out).astype(jnp.float32)

    # --- flatten B*L into one lane/sublane-dense GEMM, tiled along M.
    M = B * L
    tile_m = min(tile_m, _round_up(M, 16))     # 16: bf16 sublane packing
    m_pad = _round_up(M, tile_m)
    if m_pad != M:
        x = jnp.pad(x, ((0, m_pad - M), (0, 0)))

    y = pl.pallas_call(
        _btconv_kernel,
        out_shape=jax.ShapeDtypeStruct((m_pad, C_out), jnp.float32),
        grid=(m_pad // tile_m,),
        in_specs=[
            pl.BlockSpec((tile_m, K), lambda i: (i, 0)),   # X tile (streams over M)
            pl.BlockSpec((K, C_out), lambda i: (0, 0)),    # weight (VMEM-resident)
            pl.BlockSpec((1, C_out), lambda i: (0, 0)),    # bias   (VMEM-resident)
        ],
        out_specs=pl.BlockSpec((tile_m, C_out), lambda i: (i, 0)),
        compiler_params=pltpu.CompilerParams(
            # M-tiles are independent: shards across v7x's two TensorCores
            # even at B=1; no-op on single-TC v5e/v6e.
            dimension_semantics=("parallel",)),
    )(x, w_mat, b_mat)

    # --- glue: drop M padding, prepend the zero "null node" column, return NCW.
    y = y[:M].astype(out_dtype).reshape(B, L, C_out)
    zero = jnp.zeros((B, 1, C_out), out_dtype)
    results = jnp.transpose(jnp.concatenate([zero, y], axis=1), (0, 2, 1))
    return results, idxes


if __name__ == "__main__":
    key = jax.random.PRNGKey(0)
    B, C_in, C_out = 2, 8, 16
    L = 7                 # number of output tree positions
    N = L + 1             # nodes incl. the zero-padding sentinel at index 0

    k1, k2, k3, k4 = jax.random.split(key, 4)
    trees = jax.random.normal(k1, (B, C_in, N), dtype=jnp.float32)
    trees = trees.at[:, :, 0].set(0.0)   # sentinel zero node, as in tree-conv usage
    idxes = jax.random.randint(k2, (B, 3 * L, 1), 0, N, dtype=jnp.int32)

    # deterministic Conv1d-style params (uniform in +/- 1/sqrt(fan_in), fan_in = C_in*3)
    bound = 1.0 / jnp.sqrt(jnp.float32(C_in * 3))
    weight = jax.random.uniform(k3, (C_out, C_in, 3), jnp.float32, -bound, bound)
    bias = jax.random.uniform(k4, (C_out,), jnp.float32, -bound, bound)

    results, out_idxes = binary_tree_conv(trees, idxes, weight, bias)
    results = jax.block_until_ready(results)

    # plain-JAX f32 reference of the same forward pass
    gathered = jnp.take_along_axis(jnp.transpose(trees, (0, 2, 1)),
                                   idxes[..., 0][..., None], axis=1)
    xr = gathered.reshape(B, L, 3, C_in)
    ref = jnp.einsum('blkc,ock->blo', xr, weight) + bias
    ref = jnp.transpose(
        jnp.concatenate([jnp.zeros((B, 1, C_out), ref.dtype), ref], axis=1),
        (0, 2, 1))

    assert results.shape == (B, C_out, L + 1)
    assert out_idxes.shape == (B, 3 * L, 1)
    # bf16 MXU operands with f32 accumulation vs the pure-f32 reference.
    assert jnp.allclose(results, ref, atol=2e-2, rtol=2e-2)
    print("KERNEL_OK")
</pallas_src>

<mosaic_0001>
module attributes {stable_mosaic.version = 11 : i64} {
  func.func @_btconv_kernel(%arg0: i32, %arg1: memref<16x24xbf16, #tpu.memory_space<vmem>>, %arg2: memref<24x16xbf16, #tpu.memory_space<vmem>>, %arg3: memref<1x16xf32, #tpu.memory_space<vmem>>, %arg4: memref<16x16xf32, #tpu.memory_space<vmem>>) attributes {dimension_semantics = [#tpu.dimension_semantics<parallel>], iteration_bounds = array<i64: 1>, scalar_prefetch = 0 : i64, scratch_operands = 0 : i64, tpu.core_type = #tpu.core_type<tc>, window_params = [{transform_indices = @transform_0, window_bounds = array<i64: 16, 24>}, {pipeline_mode = #tpu.pipeline_mode<synchronous>, transform_indices = @transform_1, window_bounds = array<i64: 24, 16>}, {pipeline_mode = #tpu.pipeline_mode<synchronous>, transform_indices = @transform_2, window_bounds = array<i64: 1, 16>}, {transform_indices = @transform_3, window_bounds = array<i64: 16, 16>}]} {
    %c0 = arith.constant 0 : index
    %c0_0 = arith.constant 0 : index
    %0 = vector.load %arg1[%c0, %c0_0] : memref<16x24xbf16, #tpu.memory_space<vmem>>, vector<16x24xbf16>
    %c0_1 = arith.constant 0 : index
    %c0_2 = arith.constant 0 : index
    %1 = vector.load %arg2[%c0_1, %c0_2] : memref<24x16xbf16, #tpu.memory_space<vmem>>, vector<24x16xbf16>
    %cst = arith.constant dense<0.000000e+00> : vector<16x16xf32>
    %2 = tpu.matmul %0, %1, %cst {dimension_numbers = #tpu.dot_dimension_numbers<[1], [0], [0], [1], [0, 0, 1, 1], [], []>} : vector<16x24xbf16>, vector<24x16xbf16>, vector<16x16xf32> -> vector<16x16xf32>
    %c0_3 = arith.constant 0 : index
    %c0_4 = arith.constant 0 : index
    %3 = vector.load %arg3[%c0_3, %c0_4] : memref<1x16xf32, #tpu.memory_space<vmem>>, vector<1x16xf32>
    %4 = vector.broadcast %3 : vector<1x16xf32> to vector<16x16xf32>
    %5 = arith.addf %2, %4 : vector<16x16xf32>
    %c0_5 = arith.constant 0 : index
    %c0_6 = arith.constant 0 : index
    %6 = vector.load %arg4[%c0_5, %c0_6] : memref<16x16xf32, #tpu.memory_space<vmem>>, vector<16x16xf32>
    tpu.vector_store %arg4[%c0_5, %c0_6], %5 {strides = array<i32>} : memref<16x16xf32, #tpu.memory_space<vmem>>, vector<16x16xf32>,
    return
  }
  func.func @transform_0(%arg0: i32) -> (i32, i32) {
    %c0_i32 = arith.constant 0 : i32
    %c0_i32_0 = arith.constant 0 : i32
    return %arg0, %c0_i32 : i32, i32
  }
  func.func @transform_1(%arg0: i32) -> (i32, i32) {
    %c0_i32 = arith.constant 0 : i32
    %c0_i32_0 = arith.constant 0 : i32
    %c0_i32_1 = arith.constant 0 : i32
    return %c0_i32, %c0_i32_0 : i32, i32
  }
  func.func @transform_2(%arg0: i32) -> (i32, i32) {
    %c0_i32 = arith.constant 0 : i32
    %c0_i32_0 = arith.constant 0 : i32
    %c0_i32_1 = arith.constant 0 : i32
    return %c0_i32, %c0_i32_0 : i32, i32
  }
  func.func @transform_3(%arg0: i32) -> (i32, i32) {
    %c0_i32 = arith.constant 0 : i32
    %c0_i32_0 = arith.constant 0 : i32
    return %arg0, %c0_i32 : i32, i32
  }
}

</mosaic_0001>

<llo_original>
// kernel: binary_tree_conv.1
$region0: #{binary_tree_conv.1}
  #allocation0 [shape = 'u32[]', space=smem, size = 0x4, offset = 0x4, fixed_abs, tag = 'smem constant byte address 0x4 - core index']
  #allocation1 [shape = 'u32[144,128]{1,0:T(1,128)}', space=vmem, size = 0x12000, scoped, tag = 'internal scratch']
  %s0 = inlined_call_operand.vmem [shape: bf16[16,24], index: 0, kind: input, shape index: {}]
  %s1 = inlined_call_operand.vmem [shape: bf16[24,16], index: 1, kind: input, shape index: {}]
  %s2 = inlined_call_operand.vmem [shape: f32[1,16], index: 2, kind: input, shape index: {}]
  %s3 = inlined_call_operand.vmem [shape: f32[16,16], index: 3, kind: output, shape index: {}]
  %s4 = sld [smem:[#allocation0]]
  $region22: #{binary_tree_conv.1} parent=0
    _
  %s6 = ssub.s32 1, %s4
  %s7 = scalar_select 0, %s6, %s4
  // Predicated region
  $region2: #{binary_tree_conv.1} parent=0 // pred_check
    _
  $region3: #{binary_tree_conv.1} parent=0 // pred_check_branch
    %9 = sbr.rel (0) target = $region5
  $region4: #{binary_tree_conv.1} parent=0 // pred_region
    _
  $region5: #{binary_tree_conv.1} parent=0 // pred_fallthru
    _
  // Predicated region
  $region6: #{binary_tree_conv.1} parent=0 // pred_check
    _
  $region7: #{binary_tree_conv.1} parent=0 // pred_check_branch
    %11 = sbr.rel (0) target = $region9
  $region8: #{binary_tree_conv.1} parent=0 // pred_region
    _
  $region9: #{binary_tree_conv.1} parent=0 // pred_fallthru
    _
  // Predicated region
  $region10: #{binary_tree_conv.1} parent=0 // pred_check
    _
  $region11: #{binary_tree_conv.1} parent=0 // pred_check_branch
    %13 = sbr.rel (0) target = $region13
  $region12: #{binary_tree_conv.1} parent=0 // pred_region
    _
  $region13: #{binary_tree_conv.1} parent=0 // pred_fallthru
    _
  %v15 = vld [vmem:[%s0] sm:$0xf]
  %v16 = vld [vmem:[%s0 + $0x4] sm:$0xf]
  %v17 = vld [vmem:[%s1] sm:$0xf]
  %v18 = vld [vmem:[%s1 + $0x4] sm:$0xf]
  %v19 = vld [vmem:[%s1 + $0x8] sm:$0xf]
  %v20 = vld [vmem:[%s2] sm:$0x1]
  %v22 = vlaneseq
  %v23 = vshrl.u32 %v22, 7
  %v24 = vsub.s32 0, %v23
  %v25 = vrot.slane %v20, %v24
  %v29 = vunpack.c.l.b16 %v15
  %v30 = vunpack.c.l.b16 %v16
  %v31 = vpack.c.b16 %v30, %v29
  %v35 = vunpack.c.l.b16 %v17
  %v36 = vunpack.c.l.b16 %v18
  %v37 = vunpack.c.l.b16 %v19
  %v38 = vpack.c.b16 %v36, %v35
  %v39 = vpack.c.b16 %v37, %v37
  %vm41 = vcmask 195584
  %v43 = vsel %vm41, %v31, 0
  %vm45 = vcmask 1043456
  %v47 = vsel %vm45, %v39, 0
  %49 = vmatprep.subr.bf16.mxu0 0
  %50 = vmatpush1.bf16.msra.mxu0 %v38
  %51 = vmatprep.subr.bf16.mxu0 0
  %52 = vmatpush1.bf16.msra.mxu0 %v47
  %53 = vmatprep.subr.bf16.mxu0 0
  %54 = vmatpush1.bf16.msra.mxu0 0
  %55 = vmatprep.subr.bf16.mxu0 0
  %56 = vmatpush1.bf16.msra.mxu0 0
  %57 = vmatprep.subr.bf16.mxu0 0
  %58 = vmatpush1.bf16.msra.mxu0 0
  %59 = vmatprep.subr.bf16.mxu0 0
  %60 = vmatpush1.bf16.msra.mxu0 0
  %61 = vmatprep.subr.bf16.mxu0 0
  %62 = vmatpush1.bf16.msra.mxu0 0
  %63 = vmatprep.subr.bf16.mxu0 0
  %64 = vmatpush1.bf16.msra.mxu0 0
  %65 = vmatprep.subr.bf16.mxu0 0
  %66 = vmatpush1.bf16.msra.mxu0 0
  %67 = vmatprep.subr.bf16.mxu0 0
  %68 = vmatpush1.bf16.msra.mxu0 0
  %69 = vmatprep.subr.bf16.mxu0 0
  %70 = vmatpush1.bf16.msra.mxu0 0
  %71 = vmatprep.subr.bf16.mxu0 0
  %72 = vmatpush1.bf16.msra.mxu0 0
  %73 = vmatprep.subr.bf16.mxu0 0
  %74 = vmatpush1.bf16.msra.mxu0 0
  %75 = vmatprep.subr.bf16.mxu0 0
  %76 = vmatpush1.bf16.msra.mxu0 0
  %77 = vmatprep.subr.bf16.mxu0 0
  %78 = vmatpush1.bf16.msra.mxu0 0
  %79 = vmatprep.subr.bf16.mxu0 0
  %80 = vmatpush1.bf16.msra.mxu0 0
  %81 = vmatprep.mubr.bf16.mxu0 0
  %82 = vmatmul.mubr.bf16.gmra.mrb[0].mxu0 %v43
  %v83 = vpop.f32.mrb[0].mxu0
  %v84 = vadd.f32 %v25, %v83
  %v85 = vpop.f32.mrb[0].mxu0
  %v86 = vpop.f32.mrb[0].mxu0
  %v87 = vadd.f32 %v25, %v86
  %v88 = vpop.f32.mrb[0].mxu0
  %89 = vdwg.mxu0
  %vm90 = vcmask 130048
  %91 = vst.msk [vmem:[%s3] sm:$0xff] %vm90, %v84
  %92 = vst.msk [vmem:[%s3 + $0x8] sm:$0xff] %vm90, %v87
  // Predicated region
  $region14: #{binary_tree_conv.1} parent=0 // pred_check
    _
  $region15: #{binary_tree_conv.1} parent=0 // pred_check_branch
    %94 = sbr.rel (0) target = $region17
  $region16: #{binary_tree_conv.1} parent=0 // pred_region
    _
  $region17: #{binary_tree_conv.1} parent=0 // pred_fallthru
    _
  // Predicated region
  $region18: #{binary_tree_conv.1} parent=0 // pred_check
    _
  $region19: #{binary_tree_conv.1} parent=0 // pred_check_branch
    %96 = sbr.rel (0) target = $region21
  $region20: #{binary_tree_conv.1} parent=0 // pred_region
    _
  $region21: #{binary_tree_conv.1} parent=0 // pred_fallthru
    _

</llo_original>
